<compile_context>
chip_gen: v6e
topology: v6e:2x2x1
jax: 0.10.0
libtpu: 0.0.40
codegen_flags: <defaults>
</compile_context>

<pallas_src>
import jax
import jax.numpy as jnp
from jax.experimental import pallas as pl
from jax.experimental.pallas import tpu as pltpu


# --------------------------------------------------------------------------- #
# Kernels
# --------------------------------------------------------------------------- #
def linear_relu_kernel(x_ref, w_ref, b_ref, o_ref):
    """One (tm, tn) output tile, full K reduction in-block: o = relu(x @ w + b)."""
    x = x_ref[...]
    w = w_ref[...]
    if w.dtype == jnp.bfloat16 and x.dtype != jnp.bfloat16:
        x = x.astype(jnp.bfloat16)          # hit the native bf16 MXU path
    o_ref[...] = jnp.maximum(
        jnp.dot(x, w, preferred_element_type=jnp.float32) + b_ref[...],
        0.0,
    ).astype(o_ref.dtype)


def linear_relu_ktiled_kernel(x_ref, w_ref, b_ref, o_ref, acc_ref):
    """K-tiled fallback: accumulate partial products, finalize on the last K step."""
    @pl.when(pl.program_id(2) == 0)
    def _():
        acc_ref[...] = jnp.zeros_like(acc_ref)

    x = x_ref[...]
    w = w_ref[...]
    if w.dtype == jnp.bfloat16 and x.dtype != jnp.bfloat16:
        x = x.astype(jnp.bfloat16)
    acc_ref[...] += jnp.dot(x, w, preferred_element_type=jnp.float32)

    @pl.when(pl.program_id(2) == pl.num_programs(2) - 1)
    def _():
        o_ref[...] = jnp.maximum(acc_ref[...] + b_ref[...], 0.0).astype(o_ref.dtype)


# --------------------------------------------------------------------------- #
# Tiling / VMEM budgeting helpers
# --------------------------------------------------------------------------- #
def _round_up(v, m):
    return ((v + m - 1) // m) * m


def _vmem_capacity_bytes():
    """Physical VMEM of the current chip; conservative (v7x) fallback."""
    try:
        info = pltpu.get_tpu_info()
        cap = getattr(info, "vmem_capacity_bytes", None)
        if cap:
            return int(cap)
    except Exception:
        pass
    return 64 << 20  # v7x per-TensorCore VMEM (smallest of the targets)


def _choose_tiles(M, K, N, x_bytes, w_bytes, o_bytes, vmem_bytes):
    """Pick (tm, tn, tk).  tk == K means the whole reduction stays in one block."""
    big_vmem = vmem_bytes >= (96 << 20)        # v5e / v6e (128 MiB) vs v7x (64 MiB)
    budget = int(0.40 * vmem_bytes)            # double-buffered working-set target

    def footprint(tm, tn, tk):                 # double-buffered in/out tiles
        return 2 * (tm * tk * x_bytes + tk * tn * w_bytes + tm * tn * o_bytes)

    # tn: lane axis (multiple of 128); the (K, tn) weight tile stays resident.
    pref_tn = 1024 if big_vmem else 512
    tn = min(_round_up(N, 128), pref_tn)
    while tn > 128 and 2 * K * tn * w_bytes > 0.6 * budget:
        tn -= 128

    # tm: sublane axis (multiple of 8).
    pref_tm = 512 if big_vmem else 256
    tm = min(_round_up(M, 8), pref_tm)
    while tm > 8 and footprint(tm, tn, K) > budget:
        tm -= 8

    # K: keep the full reduction in-block when it fits, else tile it.
    tk = K
    if footprint(tm, tn, K) > budget:
        tk = min(_round_up(K, 128), 2048)
        while tk > 128 and footprint(tm, tn, tk) > budget:
            tk -= 128

    # v7x megacore: make sure both TensorCores get work when the problem is big.
    if (pl.cdiv(_round_up(N, 128), tn) == 1 and pl.cdiv(_round_up(M, 8), tm) == 1
            and N >= 1024):
        tn = max(128, ((tn // 2) // 128) * 128)

    return tm, tn, tk


# --------------------------------------------------------------------------- #
# Forward wrapper
# --------------------------------------------------------------------------- #
def img_nn_forward(x, w_t, b, *, tm=None, tn=None, tk=None):
    """Pallas implementation of ImgNN.forward: relu(x @ w_t + b).

    x   : (M, K)          activations
    w_t : (K, N)          weight (PyTorch (N, K), transposed); f32 or bf16
    b   : (N,)            bias
    """
    M, K = x.shape
    Kw, N = w_t.shape
    assert K == Kw, "weight / input dim mismatch"
    assert b.shape == (N,)

    vmem_bytes = _vmem_capacity_bytes()
    out_dtype = x.dtype
    a_tm, a_tn, a_tk = _choose_tiles(
        M, K, N, x.dtype.itemsize, w_t.dtype.itemsize,
        jnp.dtype(out_dtype).itemsize, vmem_bytes)
    tm = a_tm if tm is None else tm
    tn = a_tn if tn is None else tn
    tk = a_tk if tk is None else tk

    b2d = b.reshape(1, N)
    grid_n = pl.cdiv(N, tn)   # OUTER axis: weight tile stationary across inner M sweep
    grid_m = pl.cdiv(M, tm)

    cost = pl.CostEstimate(
        flops=2 * M * N * K,
        transcendentals=0,
        bytes_accessed=(M * K * x.dtype.itemsize + K * N * w_t.dtype.itemsize
                        + M * N * jnp.dtype(out_dtype).itemsize + N * b.dtype.itemsize),
    )

    if tk >= K:
        # ---- full-K reduction inside one block (no reduction grid axis) ----
        est_bytes = (2 * (tm * K * x.dtype.itemsize + K * tn * w_t.dtype.itemsize
                          + tm * tn * jnp.dtype(out_dtype).itemsize)
                     + _round_up(N, 128) * b.dtype.itemsize)
        grid_spec = pltpu.PrefetchScalarGridSpec(
            num_scalar_prefetch=0,
            grid=(grid_n, grid_m),
            in_specs=[
                pl.BlockSpec((tm, K), lambda j, i: (i, 0)),    # x: re-streamed (small)
                pl.BlockSpec((K, tn), lambda j, i: (0, j)),    # w_t: resident across i
                pl.BlockSpec((1, tn), lambda j, i: (0, j)),    # bias slice
            ],
            out_specs=pl.BlockSpec((tm, tn), lambda j, i: (i, j)),
        )
        kernel = linear_relu_kernel
        dim_sem = ("parallel", "parallel")
    else:
        # ---- K-tiled fallback: weight tile (K, tn) no longer fits the budget ----
        Kp = _round_up(K, tk)
        if Kp != K:   # zero-pad the reduction so edge K-blocks contribute nothing
            x = jnp.pad(x, ((0, 0), (0, Kp - K)))
            w_t = jnp.pad(w_t, ((0, Kp - K), (0, 0)))
        est_bytes = (2 * (tm * tk * x.dtype.itemsize + tk * tn * w_t.dtype.itemsize
                          + tm * tn * jnp.dtype(out_dtype).itemsize)
                     + tm * tn * 4 + _round_up(N, 128) * b.dtype.itemsize)
        grid_spec = pltpu.PrefetchScalarGridSpec(
            num_scalar_prefetch=0,
            grid=(grid_n, grid_m, Kp // tk),
            in_specs=[
                pl.BlockSpec((tm, tk), lambda j, i, k: (i, k)),
                pl.BlockSpec((tk, tn), lambda j, i, k: (k, j)),
                pl.BlockSpec((1, tn), lambda j, i, k: (0, j)),
            ],
            out_specs=pl.BlockSpec((tm, tn), lambda j, i, k: (i, j)),
            scratch_shapes=[pltpu.VMEM((tm, tn), jnp.float32)],
        )
        kernel = linear_relu_ktiled_kernel
        dim_sem = ("parallel", "parallel", "arbitrary")

    compiler_kwargs = dict(dimension_semantics=dim_sem)
    # Generation-aware scoped-VMEM: raise above the smallest default (16 MiB on
    # v5e) whenever the estimate needs it; never above 3/4 of physical VMEM.
    if est_bytes + (2 << 20) > (16 << 20):
        compiler_kwargs["vmem_limit_bytes"] = int(
            min(est_bytes + (4 << 20), int(0.75 * vmem_bytes)))

    return pl.pallas_call(
        kernel,
        out_shape=jax.ShapeDtypeStruct((M, N), out_dtype),
        grid_spec=grid_spec,
        compiler_params=pltpu.CompilerParams(**compiler_kwargs),
        cost_estimate=cost,
    )(x, w_t, b2d)


# --------------------------------------------------------------------------- #
# Parameter init (matches nn.Linear's default uniform(-1/sqrt(in), 1/sqrt(in)))
# --------------------------------------------------------------------------- #
def init_params(key, input_dim, output_dim, param_dtype=jnp.float32):
    """Set param_dtype=jnp.bfloat16 to stream weights at half the HBM bytes
    (the kernel still accumulates in f32); f32 kept here to match nn.Linear."""
    kw, kb = jax.random.split(key)
    bound = 1.0 / jnp.sqrt(jnp.float32(input_dim))
    w = jax.random.uniform(kw, (output_dim, input_dim), jnp.float32, -bound, bound)
    b = jax.random.uniform(kb, (output_dim,), jnp.float32, -bound, bound)
    return w.T.astype(param_dtype), b   # store transposed (in, out) for the kernel


if __name__ == "__main__":
    # Small shapes consistent with the module: Linear(input_dim -> output_dim) + ReLU.
    batch, input_dim, output_dim = 8, 512, 256

    key = jax.random.PRNGKey(0)
    kx, kp = jax.random.split(key)
    x = jax.random.normal(kx, (batch, input_dim), jnp.float32)
    w_t, b = init_params(kp, input_dim, output_dim)

    out = img_nn_forward(x, w_t, b)
    out = jax.block_until_ready(out)

    # Correctness check vs pure-JAX reference of F.relu(Linear(x)).
    ref = jnp.maximum(x @ w_t.astype(jnp.float32) + b, 0.0)
    assert out.shape == (batch, output_dim)
    assert jnp.allclose(out, ref, atol=1e-5, rtol=1e-5)

    print("KERNEL_OK")
</pallas_src>

<mosaic_0001>
module attributes {stable_mosaic.version = 11 : i64} {
  func.func @linear_relu_kernel(%arg0: i32, %arg1: i32, %arg2: memref<8x512xf32, #tpu.memory_space<vmem>>, %arg3: memref<512x256xf32, #tpu.memory_space<vmem>>, %arg4: memref<1x256xf32, #tpu.memory_space<vmem>>, %arg5: memref<8x256xf32, #tpu.memory_space<vmem>>) attributes {dimension_semantics = [#tpu.dimension_semantics<parallel>, #tpu.dimension_semantics<parallel>], iteration_bounds = array<i64: 1, 1>, scalar_prefetch = 0 : i64, scratch_operands = 0 : i64, tpu.core_type = #tpu.core_type<tc>, window_params = [{transform_indices = @transform_0, window_bounds = array<i64: 8, 512>}, {transform_indices = @transform_1, window_bounds = array<i64: 512, 256>}, {transform_indices = @transform_2, window_bounds = array<i64: 1, 256>}, {transform_indices = @transform_3, window_bounds = array<i64: 8, 256>}]} {
    %c0 = arith.constant 0 : index
    %c0_0 = arith.constant 0 : index
    %0 = vector.load %arg2[%c0, %c0_0] : memref<8x512xf32, #tpu.memory_space<vmem>>, vector<8x512xf32>
    %c0_1 = arith.constant 0 : index
    %c0_2 = arith.constant 0 : index
    %1 = vector.load %arg3[%c0_1, %c0_2] : memref<512x256xf32, #tpu.memory_space<vmem>>, vector<512x256xf32>
    %cst = arith.constant dense<0.000000e+00> : vector<8x256xf32>
    %2 = tpu.matmul %0, %1, %cst {dimension_numbers = #tpu.dot_dimension_numbers<[1], [0], [0], [1], [0, 0, 1, 1], [], []>} : vector<8x512xf32>, vector<512x256xf32>, vector<8x256xf32> -> vector<8x256xf32>
    %c0_3 = arith.constant 0 : index
    %c0_4 = arith.constant 0 : index
    %3 = vector.load %arg4[%c0_3, %c0_4] : memref<1x256xf32, #tpu.memory_space<vmem>>, vector<1x256xf32>
    %4 = vector.broadcast %3 : vector<1x256xf32> to vector<8x256xf32>
    %5 = arith.addf %2, %4 : vector<8x256xf32>
    %cst_5 = arith.constant 0.000000e+00 : f32
    %6 = vector.broadcast %cst_5 : f32 to vector<8x256xf32>
    %7 = arith.maximumf %5, %6 : vector<8x256xf32>
    %c0_6 = arith.constant 0 : index
    %c0_7 = arith.constant 0 : index
    %8 = vector.load %arg5[%c0_6, %c0_7] : memref<8x256xf32, #tpu.memory_space<vmem>>, vector<8x256xf32>
    tpu.vector_store %arg5[%c0_6, %c0_7], %7 {strides = array<i32>} : memref<8x256xf32, #tpu.memory_space<vmem>>, vector<8x256xf32>,
    return
  }
  func.func @transform_0(%arg0: i32, %arg1: i32) -> (i32, i32) {
    %c0_i32 = arith.constant 0 : i32
    %c0_i32_0 = arith.constant 0 : i32
    return %arg1, %c0_i32 : i32, i32
  }
  func.func @transform_1(%arg0: i32, %arg1: i32) -> (i32, i32) {
    %c0_i32 = arith.constant 0 : i32
    %c0_i32_0 = arith.constant 0 : i32
    return %c0_i32, %arg0 : i32, i32
  }
  func.func @transform_2(%arg0: i32, %arg1: i32) -> (i32, i32) {
    %c0_i32 = arith.constant 0 : i32
    %c0_i32_0 = arith.constant 0 : i32
    return %c0_i32, %arg0 : i32, i32
  }
  func.func @transform_3(%arg0: i32, %arg1: i32) -> (i32, i32) {
    %c0_i32 = arith.constant 0 : i32
    return %arg1, %arg0 : i32, i32
  }
}

</mosaic_0001>

<llo_original>
// kernel: tpu_custom_call.1
$region0: #{tpu_custom_call.1}
  #allocation0 [shape = 'u32[]', space=smem, size = 0x4, offset = 0x4, fixed_abs, tag = 'smem constant byte address 0x4 - core index']
  #allocation1 [shape = 'u32[144,128]{1,0:T(1,128)}', space=vmem, size = 0x12000, scoped, tag = 'internal scratch']
  %s0 = inlined_call_operand.hbm [shape: f32[8,512], index: 0, kind: input, shape index: {}]
  %s1 = inlined_call_operand.hbm [shape: f32[512,256], index: 1, kind: input, shape index: {}]
  %s2 = inlined_call_operand.vmem [shape: f32[1,256], index: 2, kind: input, shape index: {}]
  %s3 = inlined_call_operand.hbm [shape: f32[8,256], index: 3, kind: output, shape index: {}]
  %s4 = sld [smem:[#allocation0]]
  $region30: #{tpu_custom_call.1} parent=0
    _
  %s6 = ssub.s32 1, %s4
  %s7 = scalar_select 0, %s6, %s4
  $region1: #{tpu_custom_call.1} parent=0
    #allocation2 [shape = 'u8[16384]{0}', space=vmem, size = 0x4000, scoped, tag = 'input window, operand 0, single buffered']
    #allocation3 [shape = 's32[1]{0}', space=sflag, size = 0x4, scoped, tag = 'scoped memory for tpu_custom_call.1']
    #allocation4 [shape = 's32[1]{0}', space=sflag, size = 0x4, scoped, tag = 'scoped memory for tpu_custom_call.1']
    #allocation5 [shape = 'u8[524288]{0}', space=vmem, size = 0x80000, scoped, tag = 'input window, operand 1, single buffered']
    #allocation6 [shape = 's32[1]{0}', space=sflag, size = 0x4, scoped, tag = 'scoped memory for tpu_custom_call.1']
    #allocation7 [shape = 'u8[8192]{0}', space=vmem, size = 0x2000, scoped, tag = 'output window, operand 0, single buffered']
    %8 = vsyncpa [#allocation3], 0
    %9 = vsyncpa [#allocation6], 0
    %10 = vsyncpa [#allocation4], 0
    // Predicated region
    $region2: #{tpu_custom_call.1} parent=1 // pred_check
      _
    $region3: #{tpu_custom_call.1} parent=1 // pred_check_branch
      %12 = sbr.rel (0) target = $region5
    $region4: #{tpu_custom_call.1} parent=1 // pred_region
      %s14 = ssub.s32 512, 512
      %15 = vsyncadd [#allocation3], %s14
      %s17 = sshll.u32 [#allocation2], 4
      %s18 = int_to_ptr.vmem [resolvable:$true] %s17
      %20 = dma.hbm_to_vmem [thread:$0]  %s0, 512, %s18, [#allocation3]
    $region5: #{tpu_custom_call.1} parent=1 // pred_fallthru
      _
    // Predicated region
    $region6: #{tpu_custom_call.1} parent=1 // pred_check
      _
    $region7: #{tpu_custom_call.1} parent=1 // pred_check_branch
      %22 = sbr.rel (0) target = $region9
    $region8: #{tpu_custom_call.1} parent=1 // pred_region
      %s24 = ssub.s32 16384, 16384
      %25 = vsyncadd [#allocation6], %s24
      %s26 = sshll.u32 [#allocation5], 4
      %s27 = int_to_ptr.vmem [resolvable:$true] %s26
      %32 = dma.hbm_to_vmem [thread:$0]  %s1, 16384, %s27, [#allocation6], 256, 256, 16
    $region9: #{tpu_custom_call.1} parent=1 // pred_fallthru
      _
    // Predicated region
    $region10: #{tpu_custom_call.1} parent=1 // pred_check
      _
    $region11: #{tpu_custom_call.1} parent=1 // pred_check_branch
      %34 = sbr.rel (0) target = $region13
    $region12: #{tpu_custom_call.1} parent=1 // pred_region
      _
    $region13: #{tpu_custom_call.1} parent=1 // pred_fallthru
      _
    // Predicated region
    $region14: #{tpu_custom_call.1} parent=1 // pred_check
      _
    $region15: #{tpu_custom_call.1} parent=1 // pred_check_branch
      %36 = sbr.rel (0) target = $region17
    $region16: #{tpu_custom_call.1} parent=1 // pred_region
      %37 = dma.done [#allocation3], 512
    $region17: #{tpu_custom_call.1} parent=1 // pred_fallthru
      _
    // Predicated region
    $region18: #{tpu_custom_call.1} parent=1 // pred_check
      _
    $region19: #{tpu_custom_call.1} parent=1 // pred_check_branch
      %39 = sbr.rel (0) target = $region21
    $region20: #{tpu_custom_call.1} parent=1 // pred_region
      %40 = dma.done [#allocation6], 16384
    $region21: #{tpu_custom_call.1} parent=1 // pred_fallthru
      _
    %v41 = vld [vmem:[#allocation2] sm:$0xff]
    %v42 = vld [vmem:[#allocation2 + $0x8] sm:$0xff]
    %v43 = vld [vmem:[#allocation2 + $0x10] sm:$0xff]
    %v44 = vld [vmem:[#allocation2 + $0x18] sm:$0xff]
    %v45 = vld [vmem:[#allocation5] sm:$0xff]
    %v46 = vld [vmem:[#allocation5 + $0x8] sm:$0xff]
    %v47 = vld [vmem:[#allocation5 + $0x10] sm:$0xff]
    %v48 = vld [vmem:[#allocation5 + $0x18] sm:$0xff]
    %v49 = vld [vmem:[#allocation5 + $0x20] sm:$0xff]
    %v50 = vld [vmem:[#allocation5 + $0x28] sm:$0xff]
    %v51 = vld [vmem:[#allocation5 + $0x30] sm:$0xff]
    %v52 = vld [vmem:[#allocation5 + $0x38] sm:$0xff]
    %v53 = vld [vmem:[#allocation5 + $0x40] sm:$0xff]
    %v54 = vld [vmem:[#allocation5 + $0x48] sm:$0xff]
    %v55 = vld [vmem:[#allocation5 + $0x50] sm:$0xff]
    %v56 = vld [vmem:[#allocation5 + $0x58] sm:$0xff]
    %v57 = vld [vmem:[#allocation5 + $0x60] sm:$0xff]
    %v58 = vld [vmem:[#allocation5 + $0x68] sm:$0xff]
    %v59 = vld [vmem:[#allocation5 + $0x70] sm:$0xff]
    %v60 = vld [vmem:[#allocation5 + $0x78] sm:$0xff]
    %v61 = vld [vmem:[#allocation5 + $0x80] sm:$0xff]
    %v62 = vld [vmem:[#allocation5 + $0x88] sm:$0xff]
    %v63 = vld [vmem:[#allocation5 + $0x90] sm:$0xff]
    %v64 = vld [vmem:[#allocation5 + $0x98] sm:$0xff]
    %v65 = vld [vmem:[#allocation5 + $0xa0] sm:$0xff]
    %v66 = vld [vmem:[#allocation5 + $0xa8] sm:$0xff]
    %v67 = vld [vmem:[#allocation5 + $0xb0] sm:$0xff]
    %v68 = vld [vmem:[#allocation5 + $0xb8] sm:$0xff]
    %v69 = vld [vmem:[#allocation5 + $0xc0] sm:$0xff]
    %v70 = vld [vmem:[#allocation5 + $0xc8] sm:$0xff]
    %v71 = vld [vmem:[#allocation5 + $0xd0] sm:$0xff]
    %v72 = vld [vmem:[#allocation5 + $0xd8] sm:$0xff]
    %v73 = vld [vmem:[#allocation5 + $0xe0] sm:$0xff]
    %v74 = vld [vmem:[#allocation5 + $0xe8] sm:$0xff]
    %v75 = vld [vmem:[#allocation5 + $0xf0] sm:$0xff]
    %v76 = vld [vmem:[#allocation5 + $0xf8] sm:$0xff]
    %v77 = vld [vmem:[#allocation5 + $0x100] sm:$0xff]
    %v78 = vld [vmem:[#allocation5 + $0x108] sm:$0xff]
    %v79 = vld [vmem:[#allocation5 + $0x110] sm:$0xff]
    %v80 = vld [vmem:[#allocation5 + $0x118] sm:$0xff]
    %v81 = vld [vmem:[#allocation5 + $0x120] sm:$0xff]
    %v82 = vld [vmem:[#allocation5 + $0x128] sm:$0xff]
    %v83 = vld [vmem:[#allocation5 + $0x130] sm:$0xff]
    %v84 = vld [vmem:[#allocation5 + $0x138] sm:$0xff]
    %v85 = vld [vmem:[#allocation5 + $0x140] sm:$0xff]
    %v86 = vld [vmem:[#allocation5 + $0x148] sm:$0xff]
    %v87 = vld [vmem:[#allocation5 + $0x150] sm:$0xff]
    %v88 = vld [vmem:[#allocation5 + $0x158] sm:$0xff]
    %v89 = vld [vmem:[#allocation5 + $0x160] sm:$0xff]
    %v90 = vld [vmem:[#allocation5 + $0x168] sm:$0xff]
    %v91 = vld [vmem:[#allocation5 + $0x170] sm:$0xff]
    %v92 = vld [vmem:[#allocation5 + $0x178] sm:$0xff]
    %v93 = vld [vmem:[#allocation5 + $0x180] sm:$0xff]
    %v94 = vld [vmem:[#allocation5 + $0x188] sm:$0xff]
    %v95 = vld [vmem:[#allocation5 + $0x190] sm:$0xff]
    %v96 = vld [vmem:[#allocation5 + $0x198] sm:$0xff]
    %v97 = vld [vmem:[#allocation5 + $0x1a0] sm:$0xff]
    %v98 = vld [vmem:[#allocation5 + $0x1a8] sm:$0xff]
    %v99 = vld [vmem:[#allocation5 + $0x1b0] sm:$0xff]
    %v100 = vld [vmem:[#allocation5 + $0x1b8] sm:$0xff]
    %v101 = vld [vmem:[#allocation5 + $0x1c0] sm:$0xff]
    %v102 = vld [vmem:[#allocation5 + $0x1c8] sm:$0xff]
    %v103 = vld [vmem:[#allocation5 + $0x1d0] sm:$0xff]
    %v104 = vld [vmem:[#allocation5 + $0x1d8] sm:$0xff]
    %v105 = vld [vmem:[#allocation5 + $0x1e0] sm:$0xff]
    %v106 = vld [vmem:[#allocation5 + $0x1e8] sm:$0xff]
    %v107 = vld [vmem:[#allocation5 + $0x1f0] sm:$0xff]
    %v108 = vld [vmem:[#allocation5 + $0x1f8] sm:$0xff]
    %v109 = vld [vmem:[#allocation5 + $0x200] sm:$0xff]
    %v110 = vld [vmem:[#allocation5 + $0x208] sm:$0xff]
    %v111 = vld [vmem:[#allocation5 + $0x210] sm:$0xff]
    %v112 = vld [vmem:[#allocation5 + $0x218] sm:$0xff]
    %v113 = vld [vmem:[#allocation5 + $0x220] sm:$0xff]
    %v114 = vld [vmem:[#allocation5 + $0x228] sm:$0xff]
    %v115 = vld [vmem:[#allocation5 + $0x230] sm:$0xff]
    %v116 = vld [vmem:[#allocation5 + $0x238] sm:$0xff]
    %v117 = vld [vmem:[#allocation5 + $0x240] sm:$0xff]
    %v118 = vld [vmem:[#allocation5 + $0x248] sm:$0xff]
    %v119 = vld [vmem:[#allocation5 + $0x250] sm:$0xff]
    %v120 = vld [vmem:[#allocation5 + $0x258] sm:$0xff]
    %v121 = vld [vmem:[#allocation5 + $0x260] sm:$0xff]
    %v122 = vld [vmem:[#allocation5 + $0x268] sm:$0xff]
    %v123 = vld [vmem:[#allocation5 + $0x270] sm:$0xff]
    %v124 = vld [vmem:[#allocation5 + $0x278] sm:$0xff]
    %v125 = vld [vmem:[#allocation5 + $0x280] sm:$0xff]
    %v126 = vld [vmem:[#allocation5 + $0x288] sm:$0xff]
    %v127 = vld [vmem:[#allocation5 + $0x290] sm:$0xff]
    %v128 = vld [vmem:[#allocation5 + $0x298] sm:$0xff]
    %v129 = vld [vmem:[#allocation5 + $0x2a0] sm:$0xff]
    %v130 = vld [vmem:[#allocation5 + $0x2a8] sm:$0xff]
    %v131 = vld [vmem:[#allocation5 + $0x2b0] sm:$0xff]
    %v132 = vld [vmem:[#allocation5 + $0x2b8] sm:$0xff]
    %v133 = vld [vmem:[#allocation5 + $0x2c0] sm:$0xff]
    %v134 = vld [vmem:[#allocation5 + $0x2c8] sm:$0xff]
    %v135 = vld [vmem:[#allocation5 + $0x2d0] sm:$0xff]
    %v136 = vld [vmem:[#allocation5 + $0x2d8] sm:$0xff]
    %v137 = vld [vmem:[#allocation5 + $0x2e0] sm:$0xff]
    %v138 = vld [vmem:[#allocation5 + $0x2e8] sm:$0xff]
    %v139 = vld [vmem:[#allocation5 + $0x2f0] sm:$0xff]
    %v140 = vld [vmem:[#allocation5 + $0x2f8] sm:$0xff]
    %v141 = vld [vmem:[#allocation5 + $0x300] sm:$0xff]
    %v142 = vld [vmem:[#allocation5 + $0x308] sm:$0xff]
    %v143 = vld [vmem:[#allocation5 + $0x310] sm:$0xff]
    %v144 = vld [vmem:[#allocation5 + $0x318] sm:$0xff]
    %v145 = vld [vmem:[#allocation5 + $0x320] sm:$0xff]
    %v146 = vld [vmem:[#allocation5 + $0x328] sm:$0xff]
    %v147 = vld [vmem:[#allocation5 + $0x330] sm:$0xff]
    %v148 = vld [vmem:[#allocation5 + $0x338] sm:$0xff]
    %v149 = vld [vmem:[#allocation5 + $0x340] sm:$0xff]
    %v150 = vld [vmem:[#allocation5 + $0x348] sm:$0xff]
    %v151 = vld [vmem:[#allocation5 + $0x350] sm:$0xff]
    %v152 = vld [vmem:[#allocation5 + $0x358] sm:$0xff]
    %v153 = vld [vmem:[#allocation5 + $0x360] sm:$0xff]
    %v154 = vld [vmem:[#allocation5 + $0x368] sm:$0xff]
    %v155 = vld [vmem:[#allocation5 + $0x370] sm:$0xff]
    %v156 = vld [vmem:[#allocation5 + $0x378] sm:$0xff]
    %v157 = vld [vmem:[#allocation5 + $0x380] sm:$0xff]
    %v158 = vld [vmem:[#allocation5 + $0x388] sm:$0xff]
    %v159 = vld [vmem:[#allocation5 + $0x390] sm:$0xff]
    %v160 = vld [vmem:[#allocation5 + $0x398] sm:$0xff]
    %v161 = vld [vmem:[#allocation5 + $0x3a0] sm:$0xff]
    %v162 = vld [vmem:[#allocation5 + $0x3a8] sm:$0xff]
    %v163 = vld [vmem:[#allocation5 + $0x3b0] sm:$0xff]
    %v164 = vld [vmem:[#allocation5 + $0x3b8] sm:$0xff]
    %v165 = vld [vmem:[#allocation5 + $0x3c0] sm:$0xff]
    %v166 = vld [vmem:[#allocation5 + $0x3c8] sm:$0xff]
    %v167 = vld [vmem:[#allocation5 + $0x3d0] sm:$0xff]
    %v168 = vld [vmem:[#allocation5 + $0x3d8] sm:$0xff]
    %v169 = vld [vmem:[#allocation5 + $0x3e0] sm:$0xff]
    %v170 = vld [vmem:[#allocation5 + $0x3e8] sm:$0xff]
    %v171 = vld [vmem:[#allocation5 + $0x3f0] sm:$0xff]
    %v172 = vld [vmem:[#allocation5 + $0x3f8] sm:$0xff]
    %v173 = vld [vmem:[%s2] sm:$0x3]
    %v175 = vlaneseq
    %v176 = vshrl.u32 %v175, 7
    %v177 = vsub.s32 0, %v176
    %v178 = vrot.slane %v173, %v177
    %v179 = vlaneseq
    %v180 = vshrl.u32 %v179, 7
    %v181 = vsub.s32 1, %v180
    %v182 = vrot.slane %v173, %v181
    %185 = vmatprep.subr.mxu0 %v76
    %186 = vmatpush1.msra.mxu0 %v75
    %187 = vmatprep.subr.mxu0 %v74
    %188 = vmatpush1.msra.mxu0 %v73
    %189 = vmatprep.subr.mxu0 %v72
    %190 = vmatpush1.msra.mxu0 %v71
    %191 = vmatprep.subr.mxu0 %v70
    %192 = vmatpush1.msra.mxu0 %v69
    %193 = vmatprep.subr.mxu0 %v68
    %194 = vmatpush1.msra.mxu0 %v67
    %195 = vmatprep.subr.mxu0 %v66
    %196 = vmatpush1.msra.mxu0 %v65
    %197 = vmatprep.subr.mxu0 %v64
    %198 = vmatpush1.msra.mxu0 %v63
    %199 = vmatprep.subr.mxu0 %v62
    %200 = vmatpush1.msra.mxu0 %v61
    %201 = vmatprep.subr.mxu0 %v60
    %202 = vmatpush1.msra.mxu0 %v59
    %203 = vmatprep.subr.mxu0 %v58
    %204 = vmatpush1.msra.mxu0 %v57
    %205 = vmatprep.subr.mxu0 %v56
    %206 = vmatpush1.msra.mxu0 %v55
    %207 = vmatprep.subr.mxu0 %v54
    %208 = vmatpush1.msra.mxu0 %v53
    %209 = vmatprep.subr.mxu0 %v52
    %210 = vmatpush1.msra.mxu0 %v51
    %211 = vmatprep.subr.mxu0 %v50
    %212 = vmatpush1.msra.mxu0 %v49
    %213 = vmatprep.subr.mxu0 %v48
    %214 = vmatpush1.msra.mxu0 %v47
    %215 = vmatprep.subr.mxu0 %v46
    %216 = vmatpush1.msra.mxu0 %v45
    %217 = vmatprep.subr.mxu0 %v108
    %218 = vmatpush2.msra.mxu0 %v107
    %219 = vmatprep.subr.mxu0 %v106
    %220 = vmatpush2.msra.mxu0 %v105
    %221 = vmatprep.subr.mxu0 %v104
    %222 = vmatpush2.msra.mxu0 %v103
    %223 = vmatprep.subr.mxu0 %v102
    %224 = vmatpush2.msra.mxu0 %v101
    %225 = vmatprep.subr.mxu0 %v100
    %226 = vmatpush2.msra.mxu0 %v99
    %227 = vmatprep.subr.mxu0 %v98
    %228 = vmatpush2.msra.mxu0 %v97
    %229 = vmatprep.subr.mxu0 %v96
    %230 = vmatpush2.msra.mxu0 %v95
    %231 = vmatprep.subr.mxu0 %v94
    %232 = vmatpush2.msra.mxu0 %v93
    %233 = vmatprep.subr.mxu0 %v92
    %234 = vmatpush2.msra.mxu0 %v91
    %235 = vmatprep.subr.mxu0 %v90
    %236 = vmatpush2.msra.mxu0 %v89
    %237 = vmatprep.subr.mxu0 %v88
    %238 = vmatpush2.msra.mxu0 %v87
    %239 = vmatprep.subr.mxu0 %v86
    %240 = vmatpush2.msra.mxu0 %v85
    %241 = vmatprep.subr.mxu0 %v84
    %242 = vmatpush2.msra.mxu0 %v83
    %243 = vmatprep.subr.mxu0 %v82
    %244 = vmatpush2.msra.mxu0 %v81
    %245 = vmatprep.subr.mxu0 %v80
    %246 = vmatpush2.msra.mxu0 %v79
    %247 = vmatprep.subr.mxu0 %v78
    %248 = vmatpush2.msra.mxu0 %v77
    %249 = vmatprep.mubr.f32.mxu0 %v42
    %250 = vmatmul.mubr.f32.gmra.mxu0 %v41
    %v251 = vpop.f32.mrf.mxu0
    %v252 = vadd.f32 %v178, %v251
    %v253 = vpop.f32.mrf.mxu0
    %v254 = vadd.f32 %v182, %v253
    %255 = vdwg.mxu0
    %256 = vmatprep.subr.mxu0 %v140
    %257 = vmatpush1.msra.mxu0 %v139
    %258 = vmatprep.subr.mxu0 %v138
    %259 = vmatpush1.msra.mxu0 %v137
    %260 = vmatprep.subr.mxu0 %v136
    %261 = vmatpush1.msra.mxu0 %v135
    %262 = vmatprep.subr.mxu0 %v134
    %263 = vmatpush1.msra.mxu0 %v133
    %264 = vmatprep.subr.mxu0 %v132
    %265 = vmatpush1.msra.mxu0 %v131
    %266 = vmatprep.subr.mxu0 %v130
    %267 = vmatpush1.msra.mxu0 %v129
    %268 = vmatprep.subr.mxu0 %v128
    %269 = vmatpush1.msra.mxu0 %v127
    %270 = vmatprep.subr.mxu0 %v126
    %271 = vmatpush1.msra.mxu0 %v125
    %272 = vmatprep.subr.mxu0 %v124
    %273 = vmatpush1.msra.mxu0 %v123
    %274 = vmatprep.subr.mxu0 %v122
    %275 = vmatpush1.msra.mxu0 %v121
    %276 = vmatprep.subr.mxu0 %v120
    %277 = vmatpush1.msra.mxu0 %v119
    %278 = vmatprep.subr.mxu0 %v118
    %279 = vmatpush1.msra.mxu0 %v117
    %280 = vmatprep.subr.mxu0 %v116
    %281 = vmatpush1.msra.mxu0 %v115
    %282 = vmatprep.subr.mxu0 %v114
    %283 = vmatpush1.msra.mxu0 %v113
    %284 = vmatprep.subr.mxu0 %v112
    %285 = vmatpush1.msra.mxu0 %v111
    %286 = vmatprep.subr.mxu0 %v110
    %287 = vmatpush1.msra.mxu0 %v109
    %288 = vmatprep.subr.mxu0 %v172
    %289 = vmatpush2.msra.mxu0 %v171
    %290 = vmatprep.subr.mxu0 %v170
    %291 = vmatpush2.msra.mxu0 %v169
    %292 = vmatprep.subr.mxu0 %v168
    %293 = vmatpush2.msra.mxu0 %v167
    %294 = vmatprep.subr.mxu0 %v166
    %295 = vmatpush2.msra.mxu0 %v165
    %296 = vmatprep.subr.mxu0 %v164
    %297 = vmatpush2.msra.mxu0 %v163
    %298 = vmatprep.subr.mxu0 %v162
    %299 = vmatpush2.msra.mxu0 %v161
    %300 = vmatprep.subr.mxu0 %v160
    %301 = vmatpush2.msra.mxu0 %v159
    %302 = vmatprep.subr.mxu0 %v158
    %303 = vmatpush2.msra.mxu0 %v157
    %304 = vmatprep.subr.mxu0 %v156
    %305 = vmatpush2.msra.mxu0 %v155
    %306 = vmatprep.subr.mxu0 %v154
    %307 = vmatpush2.msra.mxu0 %v153
    %308 = vmatprep.subr.mxu0 %v152
    %309 = vmatpush2.msra.mxu0 %v151
    %310 = vmatprep.subr.mxu0 %v150
    %311 = vmatpush2.msra.mxu0 %v149
    %312 = vmatprep.subr.mxu0 %v148
    %313 = vmatpush2.msra.mxu0 %v147
    %314 = vmatprep.subr.mxu0 %v146
    %315 = vmatpush2.msra.mxu0 %v145
    %316 = vmatprep.subr.mxu0 %v144
    %317 = vmatpush2.msra.mxu0 %v143
    %318 = vmatprep.subr.mxu0 %v142
    %319 = vmatpush2.msra.mxu0 %v141
    %320 = vmatprep.mubr.f32.mxu0 %v44
    %321 = vmatmul.mubr.f32.gmra.mxu0 %v43
    %v322 = vpop.f32.mrf.mxu0
    %v323 = vadd.f32 %v252, %v322
    %v324 = vpop.f32.mrf.mxu0
    %v325 = vadd.f32 %v254, %v324
    %326 = vdwg.mxu0
    %v327 = vmax.f32 %v323, 0.0
    %v328 = vmax.f32 %v325, 0.0
    %329 = vst [vmem:[#allocation7] sm:$0xff] %v327
    %330 = vst [vmem:[#allocation7 + $0x8] sm:$0xff] %v328
    // Predicated region
    $region22: #{tpu_custom_call.1} parent=1 // pred_check
      _
    $region23: #{tpu_custom_call.1} parent=1 // pred_check_branch
      %332 = sbr.rel (0) target = $region25
    $region24: #{tpu_custom_call.1} parent=1 // pred_region
      %s334 = ssub.s32 256, 256
      %335 = vsyncadd [#allocation4], %s334
      %s337 = sshll.u32 [#allocation7], 4
      %s338 = int_to_ptr.vmem [resolvable:$true] %s337
      %340 = dma.vmem_to_hbm [thread:$0]  %s338, 256, %s3, [#allocation4]
    $region25: #{tpu_custom_call.1} parent=1 // pred_fallthru
      _
    // Predicated region
    $region26: #{tpu_custom_call.1} parent=1 // pred_check
      _
    $region27: #{tpu_custom_call.1} parent=1 // pred_check_branch
      %342 = sbr.rel (0) target = $region29
    $region28: #{tpu_custom_call.1} parent=1 // pred_region
      %343 = dma.done [#allocation4], 256
    $region29: #{tpu_custom_call.1} parent=1 // pred_fallthru
      _
    %344 = vsyncpa [#allocation3], 1
    %345 = vsyncpa [#allocation6], 1
    %346 = vsyncpa [#allocation4], 1

</llo_original>
